<compile_context>
chip_gen: v7x
topology: tpu7x:2x2x1
jax: 0.10.0
libtpu: 0.0.40
codegen_flags: <defaults>
</compile_context>

<pallas_src>
import jax
import jax.numpy as jnp
from jax.experimental import pallas as pl
from jax.experimental.pallas import tpu as pltpu


_LANE = 128
_SUBLANE = 8
_DATA_VMEM_BUDGET = 8 << 20          # per-grid-step budget for pipelined data tiles


# --------------------------------------------------------------------------
# tiling helpers
# --------------------------------------------------------------------------
def _pick_hw_tile(hw, bytes_per_col, target=2048, budget=_DATA_VMEM_BUDGET):
    """Largest multiple-of-128 divisor of hw within target and VMEM budget."""
    divs = [t for t in range(_LANE, hw + 1, _LANE) if hw % t == 0]
    if not divs:
        # No 128-multiple divisor: single full-width block (block == full dim).
        return hw
    ok = [t for t in divs if t <= target and t * bytes_per_col <= budget]
    return max(ok) if ok else min(divs)


def _pick_nk_tile(nk, h_in, w_in, h_out, w_out, m_target=256,
                  budget=_DATA_VMEM_BUDGET):
    """Divisor of nk so the big W-interp matmul has M = t_nk*h_out >= 256
    (MXU fill on v6e/v7x; v5e only needs 128), prefers >= 4 grid steps
    (v7x: 2 TCs each double-buffered), keeps sublane alignment and VMEM budget.
    """
    bytes_per_plane = (2 * 2 * h_in * w_in        # bf16 input tile, double-buffered
                       + 4 * h_out * w_in         # f32 row scratch (single)
                       + 2 * 4 * h_out * w_out)   # f32 output tile, double-buffered
    divs = [d for d in range(1, nk + 1) if nk % d == 0]
    align = [d for d in divs
             if d == nk or ((d * h_in) % _SUBLANE == 0
                            and (d * h_out) % _SUBLANE == 0)]
    fits = [d for d in align if d * bytes_per_plane <= budget] or align
    target_rows = min(m_target, nk * h_out)
    for min_steps in (4, 2, 1):
        cand = [d for d in fits
                if nk // d >= min_steps and d * h_out >= target_rows]
        if cand:
            return min(cand)
    return max(fits)


# --------------------------------------------------------------------------
# 1-D bilinear interpolation matrix (PyTorch align_corners=False semantics)
# --------------------------------------------------------------------------
def bilinear_matrix(in_size, out_size):
    scale = in_size / out_size
    dst = jnp.arange(out_size, dtype=jnp.float32)
    src = (dst + 0.5) * scale - 0.5
    src = jnp.maximum(src, 0.0)                     # PyTorch clamps negative src
    i0 = jnp.clip(jnp.floor(src).astype(jnp.int32), 0, in_size - 1)
    i1 = jnp.minimum(i0 + 1, in_size - 1)
    w1 = src - i0.astype(jnp.float32)
    w0 = 1.0 - w1
    rows = jnp.arange(out_size)
    M = jnp.zeros((out_size, in_size), jnp.float32)
    M = M.at[rows, i0].add(w0)
    M = M.at[rows, i1].add(w1)
    return M


# --------------------------------------------------------------------------
# Kernel 1: heatmap head (two 1x1 convs + ReLU), NCHW-native, weight-stationary
# --------------------------------------------------------------------------
def _head_kernel(x_ref, w1_ref, b1_ref, w2_ref, b2_ref, o_ref):
    x = x_ref[0]                                               # (C_in, T_HW) f32
    h = jnp.dot(w1_ref[...], x, preferred_element_type=jnp.float32)
    h = jnp.maximum(h + b1_ref[...], 0.0)                      # (C_inter, T_HW)
    y = jnp.dot(w2_ref[...], h, preferred_element_type=jnp.float32)
    o_ref[0] = (y + b2_ref[...]).astype(o_ref.dtype)           # (K, T_HW) bf16


def heatmap_head(x3, w1, b1, w2, b2, out_dtype=jnp.bfloat16):
    """x3: (N, C_in, H*W) float32 -> (N, K, H*W) out_dtype (bf16 intermediate)."""
    N, C_in, HW = x3.shape
    C_inter = w1.shape[0]
    K = w2.shape[0]
    in_bytes = x3.dtype.itemsize
    out_bytes = jnp.dtype(out_dtype).itemsize
    # Double-buffered input + output tile bytes per lane column.
    bytes_per_col = 2 * (C_in * in_bytes + K * out_bytes)
    t_hw = _pick_hw_tile(HW, bytes_per_col)
    grid = (N, HW // t_hw)
    cost = pl.CostEstimate(
        flops=int(2 * N * HW * (C_in * C_inter + C_inter * K)),
        transcendentals=0,
        bytes_accessed=int(N * C_in * HW * in_bytes + N * K * HW * out_bytes
                           + 4 * (C_in * C_inter + C_inter * K + C_inter + K)),
    )
    return pl.pallas_call(
        _head_kernel,
        out_shape=jax.ShapeDtypeStruct((N, K, HW), out_dtype),
        grid_spec=pltpu.PrefetchScalarGridSpec(
            num_scalar_prefetch=0,
            grid=grid,
            in_specs=[
                pl.BlockSpec((1, C_in, t_hw), lambda n, j: (n, 0, j)),
                pl.BlockSpec((C_inter, C_in), lambda n, j: (0, 0)),
                pl.BlockSpec((C_inter, 1), lambda n, j: (0, 0)),
                pl.BlockSpec((K, C_inter), lambda n, j: (0, 0)),
                pl.BlockSpec((K, 1), lambda n, j: (0, 0)),
            ],
            out_specs=pl.BlockSpec((1, K, t_hw), lambda n, j: (n, 0, j)),
        ),
        compiler_params=pltpu.CompilerParams(
            dimension_semantics=("parallel", "parallel"),
            vmem_limit_bytes=32 * 1024 * 1024),
        cost_estimate=cost,
    )(x3, w1, b1, w2, b2)


# --------------------------------------------------------------------------
# Kernel 2: batched bilinear upsample (align_corners=False) + sigmoid
#   H-interp first (small per-plane matmuls into a VMEM row scratch),
#   W-interp last as ONE big (t_nk*H_out, W_in) @ (W_in, W_out) MXU matmul,
#   single bulk sigmoid + single bulk store.
# --------------------------------------------------------------------------
def _upsample_sigmoid_kernel(hm_ref, ry_ref, rxt_ref, o_ref, rows_ref):
    h_out, h_in = ry_ref.shape
    t_nk = o_ref.shape[0] // h_out
    ry = ry_ref[...]                                           # (H_out, H_in)
    # H interpolation: per-plane small matmuls on the narrow (H_in, W_in) data.
    # Slice starts are multiples of H_in / H_out; _pick_nk_tile keeps blocks
    # sublane-aligned (relayout copies only if H_in itself is not 8-aligned).
    for b in range(t_nk):
        plane = hm_ref[b * h_in:(b + 1) * h_in, :].astype(jnp.float32)
        rows_ref[b * h_out:(b + 1) * h_out, :] = jnp.dot(
            ry, plane, preferred_element_type=jnp.float32)     # (H_out, W_in)
    # W interpolation: one big MXU matmul with M = t_nk*H_out, then one bulk
    # sigmoid and one bulk store.
    slab = jnp.dot(rows_ref[...], rxt_ref[...],
                   preferred_element_type=jnp.float32)         # (t_nk*H_out, W_out)
    o_ref[...] = jax.nn.sigmoid(slab).astype(o_ref.dtype)


def upsample_sigmoid(hm2d, ry, rxt, nk):
    """hm2d: (nk*H_in, W_in) stacked planes -> (nk*H_out, W_out) float32."""
    rows_in, W_in = hm2d.shape
    H_in = rows_in // nk
    H_out = ry.shape[0]
    W_out = rxt.shape[1]
    t_nk = _pick_nk_tile(nk, H_in, W_in, H_out, W_out)
    grid = (nk // t_nk,)
    cost = pl.CostEstimate(
        flops=int(2 * nk * (H_out * H_in * W_in + H_out * W_in * W_out)),
        transcendentals=int(2 * nk * H_out * W_out),   # sigmoid = exp + reciprocal
        bytes_accessed=int(nk * H_in * W_in * hm2d.dtype.itemsize
                           + 4 * nk * H_out * W_out
                           + 4 * (W_in * W_out + H_out * H_in)),
    )
    return pl.pallas_call(
        _upsample_sigmoid_kernel,
        out_shape=jax.ShapeDtypeStruct((nk * H_out, W_out), jnp.float32),
        grid_spec=pltpu.PrefetchScalarGridSpec(
            num_scalar_prefetch=0,
            grid=grid,
            in_specs=[
                pl.BlockSpec((t_nk * H_in, W_in), lambda i: (i, 0)),
                pl.BlockSpec((H_out, H_in), lambda i: (0, 0)),
                pl.BlockSpec((W_in, W_out), lambda i: (0, 0)),
            ],
            out_specs=pl.BlockSpec((t_nk * H_out, W_out), lambda i: (i, 0)),
            scratch_shapes=[pltpu.VMEM((t_nk * H_out, W_in), jnp.float32)],
        ),
        compiler_params=pltpu.CompilerParams(
            dimension_semantics=("parallel",),
            vmem_limit_bytes=32 * 1024 * 1024),
        cost_estimate=cost,
    )(hm2d, ry, rxt)


# --------------------------------------------------------------------------
# Full Decoder forward (NCHW in, NCHW out, no HBM transposes)
# --------------------------------------------------------------------------
def decoder_forward(x_nchw, params, out_size):
    """x_nchw: (N, C_in, H, W) float32; returns (N, K, H_out, W_out) float32."""
    N, C_in, H, W = x_nchw.shape
    w1, b1, w2, b2 = params["w1"], params["b1"], params["w2"], params["b2"]
    K = w2.shape[0]
    H_out, W_out = out_size

    # 1x1 conv head, NCHW native: free contiguous reshape, lane dim = H*W.
    x3 = x_nchw.reshape(N, C_in, H * W)
    hm = heatmap_head(x3, w1, b1, w2, b2)                      # (N, K, H*W) bf16

    # Free contiguous reshape to stacked plane rows for the upsample kernel.
    hm2d = hm.reshape(N * K * H, W)                            # (N*K*H_in, W_in)

    ry = bilinear_matrix(H, H_out)                             # (H_out, H_in)
    rxt = bilinear_matrix(W, W_out).T                          # (W_in, W_out)

    out2d = upsample_sigmoid(hm2d, ry, rxt, N * K)             # (N*K*H_out, W_out)
    return out2d.reshape(N, K, H_out, W_out)                   # free reshape


def init_params(key, n_input_channels, n_inter_channels, n_heatmaps):
    k1, k2, k3, k4 = jax.random.split(key, 4)
    # Conv2d 1x1 weights stored as (C_out, C_in) (== PyTorch weight[:, :, 0, 0]);
    # biases as (C_out, 1) so they broadcast along the lane (spatial) dim.
    w1 = jax.random.normal(k1, (n_inter_channels, n_input_channels), jnp.float32) * 0.1
    b1 = jax.random.normal(k2, (n_inter_channels, 1), jnp.float32) * 0.1
    w2 = jax.random.normal(k3, (n_heatmaps, n_inter_channels), jnp.float32) * 0.1
    b2 = jax.random.normal(k4, (n_heatmaps, 1), jnp.float32) * 0.1
    return {"w1": w1, "b1": b1, "w2": w2, "b2": b2}


# --------------------------------------------------------------------------
# Pure-JAX reference (same math, no Pallas, f32 throughout) for correctness
# --------------------------------------------------------------------------
def decoder_reference(x_nchw, params, out_size):
    N, C_in, H, W = x_nchw.shape
    w1, b1, w2, b2 = params["w1"], params["b1"], params["w2"], params["b2"]
    H_out, W_out = out_size
    xf = x_nchw.reshape(N, C_in, H * W)
    h = jnp.maximum(jnp.einsum("oc,ncp->nop", w1, xf) + b1[None], 0.0)
    hm = (jnp.einsum("ko,nop->nkp", w2, h) + b2[None]).reshape(N, -1, H, W)
    ry = bilinear_matrix(H, H_out)
    rx = bilinear_matrix(W, W_out)
    up = jnp.einsum("oh,nkhw,pw->nkop", ry, hm, rx)
    return jax.nn.sigmoid(up)


if __name__ == "__main__":
    # Small deterministic example.
    N = 2
    n_input_channels = 4
    n_inter_channels = 8
    n_heatmaps = 4
    H = W = 16
    out_size = (32, 32)

    key = jax.random.PRNGKey(0)
    kx, kp = jax.random.split(key)
    x = jax.random.normal(kx, (N, n_input_channels, H, W), jnp.float32)
    params = init_params(kp, n_input_channels, n_inter_channels, n_heatmaps)

    out = jax.block_until_ready(decoder_forward(x, params, out_size))
    ref = jax.block_until_ready(decoder_reference(x, params, out_size))

    assert out.shape == (N, n_heatmaps, out_size[0], out_size[1])
    assert bool(jnp.all(jnp.isfinite(out)))
    assert bool(jnp.all((out >= 0.0) & (out <= 1.0)))          # sigmoid range
    # bf16 intermediate heatmaps introduce ~1e-4-scale deviations vs f32 ref.
    assert bool(jnp.allclose(out, ref, atol=5e-3, rtol=5e-3))
    print("KERNEL_OK")
</pallas_src>

<mosaic_0001>
module attributes {stable_mosaic.version = 11 : i64} {
  func.func @_head_kernel(%arg0: i32, %arg1: i32, %arg2: memref<1x4x256xf32, #tpu.memory_space<vmem>>, %arg3: memref<8x4xf32, #tpu.memory_space<vmem>>, %arg4: memref<8x1xf32, #tpu.memory_space<vmem>>, %arg5: memref<4x8xf32, #tpu.memory_space<vmem>>, %arg6: memref<4x1xf32, #tpu.memory_space<vmem>>, %arg7: memref<1x4x256xbf16, #tpu.memory_space<vmem>>) attributes {dimension_semantics = [#tpu.dimension_semantics<parallel>, #tpu.dimension_semantics<parallel>], iteration_bounds = array<i64: 2, 1>, scalar_prefetch = 0 : i64, scratch_operands = 0 : i64, tpu.core_type = #tpu.core_type<tc>, window_params = [{transform_indices = @transform_0, window_bounds = array<i64: 1, 4, 256>}, {pipeline_mode = #tpu.pipeline_mode<synchronous>, transform_indices = @transform_1, window_bounds = array<i64: 8, 4>}, {pipeline_mode = #tpu.pipeline_mode<synchronous>, transform_indices = @transform_2, window_bounds = array<i64: 8, 1>}, {pipeline_mode = #tpu.pipeline_mode<synchronous>, transform_indices = @transform_3, window_bounds = array<i64: 4, 8>}, {pipeline_mode = #tpu.pipeline_mode<synchronous>, transform_indices = @transform_4, window_bounds = array<i64: 4, 1>}, {transform_indices = @transform_5, window_bounds = array<i64: 1, 4, 256>}]} {
    %c0 = arith.constant 0 : index
    %c0_0 = arith.constant 0 : index
    %c0_1 = arith.constant 0 : index
    %0 = vector.load %arg2[%c0, %c0_0, %c0_1] : memref<1x4x256xf32, #tpu.memory_space<vmem>>, vector<1x4x256xf32>
    %1 = vector.shape_cast %0 : vector<1x4x256xf32> to vector<4x256xf32>
    %c0_2 = arith.constant 0 : index
    %c0_3 = arith.constant 0 : index
    %2 = vector.load %arg3[%c0_2, %c0_3] : memref<8x4xf32, #tpu.memory_space<vmem>>, vector<8x4xf32>
    %cst = arith.constant dense<0.000000e+00> : vector<8x256xf32>
    %3 = tpu.matmul %2, %1, %cst {dimension_numbers = #tpu.dot_dimension_numbers<[1], [0], [0], [1], [0, 0, 1, 1], [], []>} : vector<8x4xf32>, vector<4x256xf32>, vector<8x256xf32> -> vector<8x256xf32>
    %c0_4 = arith.constant 0 : index
    %c0_5 = arith.constant 0 : index
    %4 = vector.load %arg4[%c0_4, %c0_5] : memref<8x1xf32, #tpu.memory_space<vmem>>, vector<8x1xf32>
    %5 = vector.broadcast %4 : vector<8x1xf32> to vector<8x256xf32>
    %6 = arith.addf %3, %5 : vector<8x256xf32>
    %cst_6 = arith.constant 0.000000e+00 : f32
    %7 = vector.broadcast %cst_6 : f32 to vector<8x256xf32>
    %8 = arith.maximumf %6, %7 : vector<8x256xf32>
    %c0_7 = arith.constant 0 : index
    %c0_8 = arith.constant 0 : index
    %9 = vector.load %arg5[%c0_7, %c0_8] : memref<4x8xf32, #tpu.memory_space<vmem>>, vector<4x8xf32>
    %cst_9 = arith.constant dense<0.000000e+00> : vector<4x256xf32>
    %10 = tpu.matmul %9, %8, %cst_9 {dimension_numbers = #tpu.dot_dimension_numbers<[1], [0], [0], [1], [0, 0, 1, 1], [], []>} : vector<4x8xf32>, vector<8x256xf32>, vector<4x256xf32> -> vector<4x256xf32>
    %c0_10 = arith.constant 0 : index
    %c0_11 = arith.constant 0 : index
    %11 = vector.load %arg6[%c0_10, %c0_11] : memref<4x1xf32, #tpu.memory_space<vmem>>, vector<4x1xf32>
    %12 = vector.broadcast %11 : vector<4x1xf32> to vector<4x256xf32>
    %13 = arith.addf %10, %12 : vector<4x256xf32>
    %14 = arith.truncf %13 : vector<4x256xf32> to vector<4x256xbf16>
    %c0_12 = arith.constant 0 : index
    %c0_13 = arith.constant 0 : index
    %c0_14 = arith.constant 0 : index
    %15 = vector.load %arg7[%c0_12, %c0_13, %c0_14] : memref<1x4x256xbf16, #tpu.memory_space<vmem>>, vector<1x4x256xbf16>
    %16 = vector.shape_cast %15 : vector<1x4x256xbf16> to vector<4x256xbf16>
    %17 = vector.shape_cast %14 : vector<4x256xbf16> to vector<1x4x256xbf16>
    tpu.vector_store %arg7[%c0_12, %c0_13, %c0_14], %17 {strides = array<i32>} : memref<1x4x256xbf16, #tpu.memory_space<vmem>>, vector<1x4x256xbf16>,
    return
  }
  func.func @transform_0(%arg0: i32, %arg1: i32) -> (i32, i32, i32) {
    %c0_i32 = arith.constant 0 : i32
    %c0_i32_0 = arith.constant 0 : i32
    return %arg0, %c0_i32, %arg1 : i32, i32, i32
  }
  func.func @transform_1(%arg0: i32, %arg1: i32) -> (i32, i32) {
    %c0_i32 = arith.constant 0 : i32
    %c0_i32_0 = arith.constant 0 : i32
    %c0_i32_1 = arith.constant 0 : i32
    return %c0_i32, %c0_i32_0 : i32, i32
  }
  func.func @transform_2(%arg0: i32, %arg1: i32) -> (i32, i32) {
    %c0_i32 = arith.constant 0 : i32
    %c0_i32_0 = arith.constant 0 : i32
    %c0_i32_1 = arith.constant 0 : i32
    return %c0_i32, %c0_i32_0 : i32, i32
  }
  func.func @transform_3(%arg0: i32, %arg1: i32) -> (i32, i32) {
    %c0_i32 = arith.constant 0 : i32
    %c0_i32_0 = arith.constant 0 : i32
    %c0_i32_1 = arith.constant 0 : i32
    return %c0_i32, %c0_i32_0 : i32, i32
  }
  func.func @transform_4(%arg0: i32, %arg1: i32) -> (i32, i32) {
    %c0_i32 = arith.constant 0 : i32
    %c0_i32_0 = arith.constant 0 : i32
    %c0_i32_1 = arith.constant 0 : i32
    return %c0_i32, %c0_i32_0 : i32, i32
  }
  func.func @transform_5(%arg0: i32, %arg1: i32) -> (i32, i32, i32) {
    %c0_i32 = arith.constant 0 : i32
    %c0_i32_0 = arith.constant 0 : i32
    return %arg0, %c0_i32, %arg1 : i32, i32, i32
  }
}

</mosaic_0001>

<llo_original>
// kernel: tpu_custom_call.1
$region0: #{tpu_custom_call.1}
  #allocation0 [shape = 'u32[]', space=smem, size = 0x4, offset = 0x4, fixed_abs, tag = 'smem constant byte address 0x4 - core index']
  #allocation1 [shape = 'u32[144,128]{1,0:T(1,128)}', space=vmem, size = 0x12000, scoped, tag = 'internal scratch']
  %s0 = inlined_call_operand.vmem [shape: f32[2,4,256], index: 0, kind: input, shape index: {}]
  %s1 = inlined_call_operand.vmem [shape: f32[8,4], index: 1, kind: input, shape index: {}]
  %s2 = inlined_call_operand.vmem [shape: f32[8,1], index: 2, kind: input, shape index: {}]
  %s3 = inlined_call_operand.vmem [shape: f32[4,8], index: 3, kind: input, shape index: {}]
  %s4 = inlined_call_operand.vmem [shape: f32[4,1], index: 4, kind: input, shape index: {}]
  %s5 = inlined_call_operand.hbm [shape: bf16[2,4,256], index: 5, kind: output, shape index: {}]
  %s6 = sld [smem:[#allocation0]]
  $region53: #{tpu_custom_call.1} parent=0
    _
  %s8 = ssub.s32 1, %s6
  %s9 = scalar_select 0, %s8, %s6
  $region1: #{tpu_custom_call.1} parent=0
    #allocation2 [shape = 'u8[4096]{0}', space=vmem, size = 0x1000, scoped, tag = 'output window, operand 0']
    #allocation3 [shape = 's32[2]{0}', space=sflag, size = 0x8, scoped, tag = 'scoped memory for tpu_custom_call.1']
    %10 = vsyncpa [#allocation3], 0
    %s11 = scalar_lea.sflag [#allocation3], 1
    %12 = vsyncpa %s11, 0
    loop: start=0, step=1, limit=4
    $region2: #{tpu_custom_call.1} parent=1 // loop_pre_header
      _
    $region3: #{tpu_custom_call.1} parent=1 // loop_header
      %s14 = sphi 0, %s18
      %p15 = scmp.ge.s32.totalorder %s14, 4
      %s21 = sphi 0, %s33
      %s22 = sphi 0, %s29
      %s23 = sphi 0, %s21
      %s24 = sphi 0, %s22
      %s25 = sphi 0, %s23
      %s26 = sphi 0, %s24
      %s38 = sphi 0, %s40
      %s41 = sphi 0, %s38
      %s42 = sphi 0, %s41
      %s58 = sphi 0, %s42
      %s62 = sphi 0, %s62
      %s64 = sphi 0, %s62
      %s65 = sphi 0, %s64
      %s79 = sphi 0, %s65
      %s83 = sphi 0, %s83
      %s85 = sphi 0, %s83
      %s86 = sphi 0, %s85
      %s100 = sphi 0, %s86
      %s104 = sphi 0, %s104
      %s106 = sphi 0, %s104
      %s107 = sphi 0, %s106
      %s121 = sphi 0, %s107
      %s125 = sphi 0, %s125
      %s127 = sphi 0, %s125
      %s128 = sphi 0, %s127
      %s142 = sphi 0, %s128
      %s150 = sphi 0, %s152
      %s153 = sphi 0, %s150
      %s154 = sphi 0, %s153
      %s170 = sphi 0, %s154
    $region4: #{tpu_custom_call.1} parent=1 // loop_header_branch
      %17 = sbr.rel (%p15) target = $region8
    $region5: #{tpu_custom_call.1} parent=1 // loop_body
      %s19 = ssub.s32 %s14, 1
      %s20 = ssub.s32 %s14, 2
      %s27 = sadd.s32 1, %s22
      %p28 = scmp.ge.s32.totalorder %s27, 1
      %s29 = scalar_select %p28, 0, %s27
      %s30 = sadd.s32 1, %s21
      %s31 = scalar_select %p28, %s30, %s21
      %p32 = scmp.ge.s32.totalorder %s31, 2
      %s33 = scalar_select %p32, 0, %s31
      %s34 = ssub.s32 %s21, %s33
      %s35 = ssub.s32 %s22, %s29
      %s36 = sor.u32 %s34, %s35
      %p37 = scmp.eq.s32.totalorder %s36, 0
      %s39 = sadd.s32 %s38, 1
      %s40 = scalar_select %p37, %s38, %s39
      %p43 = pneg %p37
      %p44 = scmp.eq.s32.totalorder %s14, 1
      %p45 = por %p43, %p44
      %p46 = scmp.ne.s32.totalorder %s38, %s41
      %p47 = scmp.eq.s32.totalorder %s14, 0
      %p48 = por %p46, %p47
      %p49 = scmp.ne.s32.totalorder %s38, %s41
      %p50 = scmp.eq.s32.totalorder %s19, 1
      %p51 = por %p49, %p50
      %p52 = scmp.ne.s32.totalorder %s41, %s42
      %p53 = scmp.eq.s32.totalorder %s19, 0
      %p54 = por %p52, %p53
      %p55 = scmp.ne.s32.totalorder %s41, %s42
      %p56 = scmp.eq.s32.totalorder %s20, 1
      %p57 = por %p55, %p56
      %p59 = scmp.ne.s32.totalorder %s42, %s58
      %p60 = scmp.eq.s32.totalorder %s20, 0
      %p61 = por %p59, %p60
      %s63 = sadd.s32 %s62, 1
      %p66 = scmp.eq.s32.totalorder %s14, 1
      %p67 = scmp.ne.s32.totalorder %s62, %s64
      %p68 = scmp.eq.s32.totalorder %s14, 0
      %p69 = por %p67, %p68
      %p70 = scmp.ne.s32.totalorder %s62, %s64
      %p71 = scmp.eq.s32.totalorder %s19, 1
      %p72 = por %p70, %p71
      %p73 = scmp.ne.s32.totalorder %s64, %s65
      %p74 = scmp.eq.s32.totalorder %s19, 0
      %p75 = por %p73, %p74
      %p76 = scmp.ne.s32.totalorder %s64, %s65
      %p77 = scmp.eq.s32.totalorder %s20, 1
      %p78 = por %p76, %p77
      %p80 = scmp.ne.s32.totalorder %s65, %s79
      %p81 = scmp.eq.s32.totalorder %s20, 0
      %p82 = por %p80, %p81
      %s84 = sadd.s32 %s83, 1
      %p87 = scmp.eq.s32.totalorder %s14, 1
      %p88 = scmp.ne.s32.totalorder %s83, %s85
      %p89 = scmp.eq.s32.totalorder %s14, 0
      %p90 = por %p88, %p89
      %p91 = scmp.ne.s32.totalorder %s83, %s85
      %p92 = scmp.eq.s32.totalorder %s19, 1
      %p93 = por %p91, %p92
      %p94 = scmp.ne.s32.totalorder %s85, %s86
      %p95 = scmp.eq.s32.totalorder %s19, 0
      %p96 = por %p94, %p95
      %p97 = scmp.ne.s32.totalorder %s85, %s86
      %p98 = scmp.eq.s32.totalorder %s20, 1
      %p99 = por %p97, %p98
      %p101 = scmp.ne.s32.totalorder %s86, %s100
      %p102 = scmp.eq.s32.totalorder %s20, 0
      %p103 = por %p101, %p102
      %s105 = sadd.s32 %s104, 1
      %p108 = scmp.eq.s32.totalorder %s14, 1
      %p109 = scmp.ne.s32.totalorder %s104, %s106
      %p110 = scmp.eq.s32.totalorder %s14, 0
      %p111 = por %p109, %p110
      %p112 = scmp.ne.s32.totalorder %s104, %s106
      %p113 = scmp.eq.s32.totalorder %s19, 1
      %p114 = por %p112, %p113
      %p115 = scmp.ne.s32.totalorder %s106, %s107
      %p116 = scmp.eq.s32.totalorder %s19, 0
      %p117 = por %p115, %p116
      %p118 = scmp.ne.s32.totalorder %s106, %s107
      %p119 = scmp.eq.s32.totalorder %s20, 1
      %p120 = por %p118, %p119
      %p122 = scmp.ne.s32.totalorder %s107, %s121
      %p123 = scmp.eq.s32.totalorder %s20, 0
      %p124 = por %p122, %p123
      %s126 = sadd.s32 %s125, 1
      %p129 = scmp.eq.s32.totalorder %s14, 1
      %p130 = scmp.ne.s32.totalorder %s125, %s127
      %p131 = scmp.eq.s32.totalorder %s14, 0
      %p132 = por %p130, %p131
      %p133 = scmp.ne.s32.totalorder %s125, %s127
      %p134 = scmp.eq.s32.totalorder %s19, 1
      %p135 = por %p133, %p134
      %p136 = scmp.ne.s32.totalorder %s127, %s128
      %p137 = scmp.eq.s32.totalorder %s19, 0
      %p138 = por %p136, %p137
      %p139 = scmp.ne.s32.totalorder %s127, %s128
      %p140 = scmp.eq.s32.totalorder %s20, 1
      %p141 = por %p139, %p140
      %p143 = scmp.ne.s32.totalorder %s128, %s142
      %p144 = scmp.eq.s32.totalorder %s20, 0
      %p145 = por %p143, %p144
      %s146 = ssub.s32 %s21, %s33
      %s147 = ssub.s32 %s22, %s29
      %s148 = sor.u32 %s146, %s147
      %p149 = scmp.eq.s32.totalorder %s148, 0
      %s151 = sadd.s32 %s150, 1
      %s152 = scalar_select %p149, %s150, %s151
      %p155 = pneg %p149
      %p156 = scmp.eq.s32.totalorder %s14, 1
      %p157 = por %p155, %p156
      %p158 = scmp.ne.s32.totalorder %s150, %s153
      %p159 = scmp.eq.s32.totalorder %s14, 0
      %p160 = por %p158, %p159
      %p161 = scmp.ne.s32.totalorder %s150, %s153
      %p162 = scmp.eq.s32.totalorder %s19, 1
      %p163 = por %p161, %p162
      %p164 = scmp.ne.s32.totalorder %s153, %s154
      %p165 = scmp.eq.s32.totalorder %s19, 0
      %p166 = por %p164, %p165
      %p167 = scmp.ne.s32.totalorder %s153, %s154
      %p168 = scmp.eq.s32.totalorder %s20, 1
      %p169 = por %p167, %p168
      %p171 = scmp.ne.s32.totalorder %s154, %s170
      %p172 = scmp.eq.s32.totalorder %s20, 0
      %p173 = por %p171, %p172
      %p174 = scmp.le.s32.totalorder 1, %s14
      %p175 = scmp.lt.s32.totalorder %s14, 3
      %p176 = pnand %p174, %p175
      %p177 = pneg %p176
      // Predicated region
      $region9: #{tpu_custom_call.1} parent=5 // pred_check
        _
      $region10: #{tpu_custom_call.1} parent=5 // pred_check_branch
        %179 = sbr.rel (%p176) target = $region12
      $region11: #{tpu_custom_call.1} parent=5 // pred_region
        %s180 = ssub.s32 %s14, 1
        // Predicated region
        $region13: #{tpu_custom_call.1} parent=11 // pred_check
          %p181 = pneg %p75
        $region14: #{tpu_custom_call.1} parent=11 // pred_check_branch
          %183 = sbr.rel (%p181) target = $region16
        $region15: #{tpu_custom_call.1} parent=11 // pred_region
          _
        $region16: #{tpu_custom_call.1} parent=11 // pred_fallthru
          _
        // Predicated region
        $region17: #{tpu_custom_call.1} parent=11 // pred_check
          %p184 = pneg %p96
        $region18: #{tpu_custom_call.1} parent=11 // pred_check_branch
          %186 = sbr.rel (%p184) target = $region20
        $region19: #{tpu_custom_call.1} parent=11 // pred_region
          _
        $region20: #{tpu_custom_call.1} parent=11 // pred_fallthru
          _
        // Predicated region
        $region21: #{tpu_custom_call.1} parent=11 // pred_check
          %p187 = pneg %p117
        $region22: #{tpu_custom_call.1} parent=11 // pred_check_branch
          %189 = sbr.rel (%p187) target = $region24
        $region23: #{tpu_custom_call.1} parent=11 // pred_region
          _
        $region24: #{tpu_custom_call.1} parent=11 // pred_fallthru
          _
        // Predicated region
        $region25: #{tpu_custom_call.1} parent=11 // pred_check
          %p190 = pneg %p138
        $region26: #{tpu_custom_call.1} parent=11 // pred_check_branch
          %192 = sbr.rel (%p190) target = $region28
        $region27: #{tpu_custom_call.1} parent=11 // pred_region
          _
        $region28: #{tpu_custom_call.1} parent=11 // pred_fallthru
          _
      $region12: #{tpu_custom_call.1} parent=5 // pred_fallthru
        _
      %p193 = scmp.lt.s32.totalorder %s14, 2
      // Predicated region
      $region29: #{tpu_custom_call.1} parent=5 // pred_check
        %p194 = pneg %p193
      $region30: #{tpu_custom_call.1} parent=5 // pred_check_branch
        %196 = sbr.rel (%p194) target = $region32
      $region31: #{tpu_custom_call.1} parent=5 // pred_region
        // Predicated region
        $region33: #{tpu_custom_call.1} parent=31 // pred_check
          %p197 = pneg %p48
        $region34: #{tpu_custom_call.1} parent=31 // pred_check_branch
          %199 = sbr.rel (%p197) target = $region36
        $region35: #{tpu_custom_call.1} parent=31 // pred_region
          %s200 = smul.u32 2, %s22
          %p201 = scmp.lt.s32.totalorder %s21, 1
          %s202 = scalar_select %p201, %s21, 1
          %p203 = scmp.lt.s32.totalorder %s200, 1
          %s204 = scalar_select %p203, %s200, 1
          %s205 = smul.addr %s202, 2
          %s206 = sadd.s32 %s204, %s205
          %s207 = smul.addr %s206, 4
          %s208 = scalar_lea.vmem %s0, %s207
          %s209 = smul.u32 2, %s22
        $region36: #{tpu_custom_call.1} parent=31 // pred_fallthru
          _
      $region32: #{tpu_custom_call.1} parent=5 // pred_fallthru
        _
      %p210 = scmp.le.s32.totalorder 1, %s14
      %p211 = scmp.lt.s32.totalorder %s14, 3
      %p212 = pnand %p210, %p211
      %p213 = pneg %p212
      // Predicated region
      $region37: #{tpu_custom_call.1} parent=5 // pred_check
        _
      $region38: #{tpu_custom_call.1} parent=5 // pred_check_branch
        %215 = sbr.rel (%p212) target = $region40
      $region39: #{tpu_custom_call.1} parent=5 // pred_region
        %s216 = ssub.s32 %s14, 1
        %s217 = smul.u32 2, %s24
        %p218 = scmp.lt.s32.totalorder %s23, 1
        %s219 = scalar_select %p218, %s23, 1
        %p220 = scmp.lt.s32.totalorder %s217, 1
        %s221 = scalar_select %p220, %s217, 1
        %s222 = smul.addr %s219, 2
        %s223 = sadd.s32 %s221, %s222
        %s224 = smul.addr %s223, 4
        %s225 = scalar_lea.vmem %s0, %s224
        %p226 = pneg %p54
        %p227 = pneg %p51
        %p228 = pneg %p75
        %p229 = pneg %p72
        %p230 = pneg %p96
        %p231 = pneg %p93
        %p232 = pneg %p117
        %p233 = pneg %p114
        %p234 = pneg %p138
        %p235 = pneg %p135
        %p236 = pneg %p166
        %p237 = pneg %p163
        %s238 = sand.u32 %s153, 1
        %s239 = scalar_lea.sflag [#allocation3], %s238
        %s240 = sand.u32 %s153, 1
        %s241 = smul.addr %s240, 4
        %s242 = scalar_lea.vmem [#allocation2], %s241
        %s243 = smul.u32 2, %s24
        %p244 = scmp.lt.s32.totalorder %s23, 1
        %s245 = scalar_select %p244, %s23, 1
        %p246 = scmp.lt.s32.totalorder %s243, 1
        %s247 = scalar_select %p246, %s243, 1
        %s248 = smul.addr %s245, 2
        %s249 = sadd.s32 %s247, %s248
        %s250 = smul.addr %s249, 4
        %s251 = scalar_lea.vmem %s0, %s250
        %s252 = smul.u32 2, %s24
        %s253 = smul.u32 2, %s24
        %v254 = vld [vmem:[%s251] sm:$0xff]
        %v255 = vld [vmem:[%s1] sm:$0xff]
        %v256 = vld [vmem:[%s2] sm:$0xff]
        %258 = vset.pattern.permute.xlu0 0
        %259 = vperm.xlu0 %258, %v256
        %v260 = vpop.permute.xlu0 %259
        %v263 = vcombine.high %v254, %v254
        %vm264 = vcmask 31744
        %v266 = vsel %vm264, %v255, 0
        %vm268 = vcmask 1043456
        %v269 = vsel %vm268, %v254, 0
        %v271 = vsel %vm268, %v263, 0
        %273 = vmatprep.subr.mxu0 %v271
        %274 = vmatpush1.msra.mxu0 %v269
        %275 = vmatprep.subr.mxu0 0.0
        %276 = vmatpush1.msra.mxu0 0.0
        %277 = vmatprep.subr.mxu0 0.0
        %278 = vmatpush1.msra.mxu0 0.0
        %279 = vmatprep.subr.mxu0 0.0
        %280 = vmatpush1.msra.mxu0 0.0
        %281 = vmatprep.subr.mxu0 0.0
        %282 = vmatpush1.msra.mxu0 0.0
        %283 = vmatprep.subr.mxu0 0.0
        %284 = vmatpush1.msra.mxu0 0.0
        %285 = vmatprep.subr.mxu0 0.0
        %286 = vmatpush1.msra.mxu0 0.0
        %287 = vmatprep.subr.mxu0 0.0
        %288 = vmatpush1.msra.mxu0 0.0
        %289 = vmatprep.subr.mxu0 0.0
        %290 = vmatpush1.msra.mxu0 0.0
        %291 = vmatprep.subr.mxu0 0.0
        %292 = vmatpush1.msra.mxu0 0.0
        %293 = vmatprep.subr.mxu0 0.0
        %294 = vmatpush1.msra.mxu0 0.0
        %295 = vmatprep.subr.mxu0 0.0
        %296 = vmatpush1.msra.mxu0 0.0
        %297 = vmatprep.subr.mxu0 0.0
        %298 = vmatpush1.msra.mxu0 0.0
        %299 = vmatprep.subr.mxu0 0.0
        %300 = vmatpush1.msra.mxu0 0.0
        %301 = vmatprep.subr.mxu0 0.0
        %302 = vmatpush1.msra.mxu0 0.0
        %303 = vmatprep.subr.mxu0 0.0
        %304 = vmatpush1.msra.mxu0 0.0
        %305 = vmatprep.subr.mxu0 0.0
        %306 = vmatpush1.msra.mxu0 0.0
        %307 = vmatprep.subr.mxu0 0.0
        %308 = vmatpush1.msra.mxu0 0.0
        %309 = vmatprep.subr.mxu0 0.0
        %310 = vmatpush1.msra.mxu0 0.0
        %311 = vmatprep.subr.mxu0 0.0
        %312 = vmatpush1.msra.mxu0 0.0
        %313 = vmatprep.subr.mxu0 0.0
        %314 = vmatpush1.msra.mxu0 0.0
        %315 = vmatprep.subr.mxu0 0.0
        %316 = vmatpush1.msra.mxu0 0.0
        %317 = vmatprep.subr.mxu0 0.0
        %318 = vmatpush1.msra.mxu0 0.0
        %319 = vmatprep.subr.mxu0 0.0
        %320 = vmatpush1.msra.mxu0 0.0
        %321 = vmatprep.subr.mxu0 0.0
        %322 = vmatpush1.msra.mxu0 0.0
        %323 = vmatprep.subr.mxu0 0.0
        %324 = vmatpush1.msra.mxu0 0.0
        %325 = vmatprep.subr.mxu0 0.0
        %326 = vmatpush1.msra.mxu0 0.0
        %327 = vmatprep.subr.mxu0 0.0
        %328 = vmatpush1.msra.mxu0 0.0
        %329 = vmatprep.subr.mxu0 0.0
        %330 = vmatpush1.msra.mxu0 0.0
        %331 = vmatprep.subr.mxu0 0.0
        %332 = vmatpush1.msra.mxu0 0.0
        %333 = vmatprep.subr.mxu0 0.0
        %334 = vmatpush1.msra.mxu0 0.0
        %335 = vmatprep.subr.mxu0 0.0
        %336 = vmatpush1.msra.mxu0 0.0
        %337 = vmatprep.mubr.f32.mxu0 0.0
        %338 = vmatmul.mubr.f32.gmra.mrb[0].mxu0 %v266
        %v339 = vpop.f32.mrb[0].mxu0
        %v340 = vadd.f32 %v260, %v339
        %v341 = vpop.f32.mrb[0].mxu0
        %v342 = vadd.f32 %v260, %v341
        %343 = vdwg.mxu0
        %v344 = vmax.f32 %v340, 0.0
        %v345 = vmax.f32 %v342, 0.0
        %v346 = vld [vmem:[%s3] sm:$0xf]
        %v347 = vld [vmem:[%s4] sm:$0xf]
        %349 = vset.pattern.permute.xlu0 0
        %350 = vperm.xlu0 %349, %v347
        %v351 = vpop.permute.xlu0 %350
        %vm353 = vcmask 64512
        %v355 = vsel %vm353, %v346, 0
        %357 = vmatprep.subr.mxu0 %v345
        %358 = vmatpush1.msra.mxu0 %v344
        %359 = vmatprep.subr.mxu0 0.0
        %360 = vmatpush1.msra.mxu0 0.0
        %361 = vmatprep.subr.mxu0 0.0
        %362 = vmatpush1.msra.mxu0 0.0
        %363 = vmatprep.subr.mxu0 0.0
        %364 = vmatpush1.msra.mxu0 0.0
        %365 = vmatprep.subr.mxu0 0.0
        %366 = vmatpush1.msra.mxu0 0.0
        %367 = vmatprep.subr.mxu0 0.0
        %368 = vmatpush1.msra.mxu0 0.0
        %369 = vmatprep.subr.mxu0 0.0
        %370 = vmatpush1.msra.mxu0 0.0
        %371 = vmatprep.subr.mxu0 0.0
        %372 = vmatpush1.msra.mxu0 0.0
        %373 = vmatprep.subr.mxu0 0.0
        %374 = vmatpush1.msra.mxu0 0.0
        %375 = vmatprep.subr.mxu0 0.0
        %376 = vmatpush1.msra.mxu0 0.0
        %377 = vmatprep.subr.mxu0 0.0
        %378 = vmatpush1.msra.mxu0 0.0
        %379 = vmatprep.subr.mxu0 0.0
        %380 = vmatpush1.msra.mxu0 0.0
        %381 = vmatprep.subr.mxu0 0.0
        %382 = vmatpush1.msra.mxu0 0.0
        %383 = vmatprep.subr.mxu0 0.0
        %384 = vmatpush1.msra.mxu0 0.0
        %385 = vmatprep.subr.mxu0 0.0
        %386 = vmatpush1.msra.mxu0 0.0
        %387 = vmatprep.subr.mxu0 0.0
        %388 = vmatpush1.msra.mxu0 0.0
        %389 = vmatprep.subr.mxu0 0.0
        %390 = vmatpush1.msra.mxu0 0.0
        %391 = vmatprep.subr.mxu0 0.0
        %392 = vmatpush1.msra.mxu0 0.0
        %393 = vmatprep.subr.mxu0 0.0
        %394 = vmatpush1.msra.mxu0 0.0
        %395 = vmatprep.subr.mxu0 0.0
        %396 = vmatpush1.msra.mxu0 0.0
        %397 = vmatprep.subr.mxu0 0.0
        %398 = vmatpush1.msra.mxu0 0.0
        %399 = vmatprep.subr.mxu0 0.0
        %400 = vmatpush1.msra.mxu0 0.0
        %401 = vmatprep.subr.mxu0 0.0
        %402 = vmatpush1.msra.mxu0 0.0
        %403 = vmatprep.subr.mxu0 0.0
        %404 = vmatpush1.msra.mxu0 0.0
        %405 = vmatprep.subr.mxu0 0.0
        %406 = vmatpush1.msra.mxu0 0.0
        %407 = vmatprep.subr.mxu0 0.0
        %408 = vmatpush1.msra.mxu0 0.0
        %409 = vmatprep.subr.mxu0 0.0
        %410 = vmatpush1.msra.mxu0 0.0
        %411 = vmatprep.subr.mxu0 0.0
        %412 = vmatpush1.msra.mxu0 0.0
        %413 = vmatprep.subr.mxu0 0.0
        %414 = vmatpush1.msra.mxu0 0.0
        %415 = vmatprep.subr.mxu0 0.0
        %416 = vmatpush1.msra.mxu0 0.0
        %417 = vmatprep.subr.mxu0 0.0
        %418 = vmatpush1.msra.mxu0 0.0
        %419 = vmatprep.subr.mxu0 0.0
        %420 = vmatpush1.msra.mxu0 0.0
        %421 = vmatprep.mubr.f32.mxu0 0.0
        %422 = vmatmul.mubr.f32.gmra.mrb[0].mxu0 %v355
        %v423 = vpop.f32.mrb[0].mxu0
        %v424 = vadd.f32 %v351, %v423
        %v425 = vpop.f32.mrb[0].mxu0
        %v426 = vadd.f32 %v351, %v425
        %427 = vdwg.mxu0
        %v428 = vpack.c.bf16 %v424, %v424
        %v429 = vpack.c.bf16 %v426, %v426
        %v432 = vcombine.low %v428, %v429
        %v434 = vunpack.c.l.s4 1983009808
        %v435 = vunpack.c.0.s8 %v434
        %v436 = vlaneseq
        %v437 = vshrl.u32 %v436, 7
        %v438 = vsub.s32 %v435, %v437
        %v439 = vrot.slane %v432, %v438
        %441 = vst [vmem:[%s242] sm:$0xf] %v439
        %s442 = sand.u32 %s153, 1
        %s443 = scalar_lea.sflag [#allocation3], %s442
        %s444 = sand.u32 %s153, 1
        %s445 = smul.addr %s444, 4
        %s446 = scalar_lea.vmem [#allocation2], %s445
        // Predicated region
        $region41: #{tpu_custom_call.1} parent=39 // pred_check
          %p447 = pneg %p163
        $region42: #{tpu_custom_call.1} parent=39 // pred_check_branch
          %449 = sbr.rel (%p447) target = $region44
        $region43: #{tpu_custom_call.1} parent=39 // pred_region
          %s450 = smul.u32 2, %s24
          %s452 = ssub.s32 64, 64
          %453 = vsyncadd %s443, %s452
          %s454 = smul.addr %s23, 2
          %s455 = sadd.s32 %s450, %s454
          %s456 = smul.addr %s455, 32
          %s457 = scalar_lea.hbm %s5, %s456
          %s459 = sshll.u32 %s446, 4
          %s460 = int_to_ptr.vmem [resolvable:$true] %s459
          %462 = dma.vmem_to_hbm [thread:$0]  %s460, 64, %s457, %s443
        $region44: #{tpu_custom_call.1} parent=39 // pred_fallthru
          _
      $region40: #{tpu_custom_call.1} parent=5 // pred_fallthru
        _
      %p463 = scmp.le.s32.totalorder 2, %s14
      // Predicated region
      $region45: #{tpu_custom_call.1} parent=5 // pred_check
        %p464 = pneg %p463
      $region46: #{tpu_custom_call.1} parent=5 // pred_check_branch
        %466 = sbr.rel (%p464) target = $region48
      $region47: #{tpu_custom_call.1} parent=5 // pred_region
        %s467 = ssub.s32 %s14, 2
        // Predicated region
        $region49: #{tpu_custom_call.1} parent=47 // pred_check
          %p468 = pneg %p169
        $region50: #{tpu_custom_call.1} parent=47 // pred_check_branch
          %470 = sbr.rel (%p468) target = $region52
        $region51: #{tpu_custom_call.1} parent=47 // pred_region
          %s471 = sand.u32 %s154, 1
          %s472 = scalar_lea.sflag [#allocation3], %s471
          %s473 = sand.u32 %s154, 1
          %s474 = smul.addr %s473, 4
          %s475 = scalar_lea.vmem [#allocation2], %s474
          %476 = dma.done %s472, 64
        $region52: #{tpu_custom_call.1} parent=47 // pred_fallthru
          _
      $region48: #{tpu_custom_call.1} parent=5 // pred_fallthru
        _
    $region6: #{tpu_custom_call.1} parent=1 // loop_footer
      %s18 = sadd.s32 1, %s14
    $region7: #{tpu_custom_call.1} parent=1 // loop_footer_branch
      %13 = sbr.rel target = $region3
    $region8: #{tpu_custom_call.1} parent=1 // loop_exit
      _
    %477 = vsyncpa [#allocation3], 1
    %s478 = scalar_lea.sflag [#allocation3], 1
    %479 = vsyncpa %s478, 1

</llo_original>
